<compile_context>
chip_gen: v7x
topology: tpu7x:2x2x1
jax: 0.10.0
libtpu: 0.0.40
codegen_flags: <defaults>
</compile_context>

<pallas_src>
import math
import functools

import numpy as np
import jax
import jax.numpy as jnp
from jax.experimental import pallas as pl
from jax.experimental.pallas import tpu as pltpu

EPSILON = 1e-10


# ------------------------------------------------------------------ small helpers
def next_power_of_2(x: int) -> int:
    return 1 if x == 0 else 2 ** (x - 1).bit_length()


def _round_up(x: int, m: int) -> int:
    return ((x + m - 1) // m) * m


# ------------------------------------------------------------------ host-side parameter folding
def povey_window_np(N: int) -> np.ndarray:
    # torch.hann_window(N, periodic=False) ** 0.85
    n = np.arange(N, dtype=np.float64)
    hann = 0.5 - 0.5 * np.cos(2.0 * np.pi * n / (N - 1))
    return hann ** 0.85


def build_folded_dft(N: int, n_fft: int, out_width: int, preemph_coeff: float) -> np.ndarray:
    """Fold pre-emphasis + povey window + zero-pad into a compact rDFT matrix.

    For a DC-removed frame x (length N):
        y      = diag(w) @ P @ x      (pre-emphasis with replicate-left, then window)
        X_real = y_pad @ cos,  X_imag = -y_pad @ sin
    Zero-padding only uses the first N rows of cos/sin, so everything folds into one
    (N, out_width) matrix.  Column layout (compact, lane-dense):
        col 0          : zeros  (log-energy is written here by the kernel)
        cols 1..K-1    : real DFT bins 1..K-1
        cols K..2K-3   : imag DFT bins 1..K-2   (bins 0 and K-1 are exactly zero)
        cols 2K-2..    : zero padding up to out_width (multiple of 128)
    """
    K = n_fft // 2 + 1
    w = povey_window_np(N)                                    # (N,)
    n = np.arange(N, dtype=np.float64)[:, None]
    k = np.arange(K, dtype=np.float64)[None, :]
    ang = 2.0 * np.pi * n * k / n_fft
    cos_m = np.cos(ang)                                       # (N, K)
    sin_m = np.sin(ang)                                       # (N, K)

    # pre-emphasis matrix: y[0] = (1-c)*x[0] ; y[i] = x[i] - c*x[i-1]
    P = np.eye(N)
    P[0, 0] = 1.0 - preemph_coeff
    i = np.arange(1, N)
    P[i, i - 1] = -preemph_coeff

    M = P.T * w[None, :]                                      # == P.T @ diag(w)
    real_w = M @ cos_m                                        # (N, K)
    imag_w = -(M @ sin_m)                                     # (N, K) imag sign folded in

    W = np.zeros((N, out_width), dtype=np.float64)
    W[:, 1:K] = real_w[:, 1:]                                 # real bins 1..K-1
    W[:, K:2 * K - 2] = imag_w[:, 1:K - 1]                    # imag bins 1..K-2
    return W.astype(np.float32)


# ------------------------------------------------------------------ framing (glue, snip_edges=False)
def frame_signal(x: jnp.ndarray, window_length: int, window_shift: int) -> jnp.ndarray:
    """Identical to _get_strided_batch with snip_edges=False."""
    B, S = x.shape
    num_frames = (S + window_shift // 2) // window_shift
    new_num_samples = (num_frames - 1) * window_shift + window_length
    npad = new_num_samples - S
    npad_left = (window_length - window_shift) // 2
    npad_right = npad - npad_left
    pad_left = jnp.flip(x[:, :npad_left], axis=1)
    if npad_right > 0:
        pad_right = jnp.flip(x[:, S - npad_right:], axis=1)
        xp = jnp.concatenate([pad_left, x, pad_right], axis=1)
    else:
        xp = jnp.concatenate([pad_left, x], axis=1)
    idx = (jnp.arange(num_frames)[:, None] * window_shift
           + jnp.arange(window_length)[None, :])              # (T, N)
    return xp[:, idx]                                          # (B, T, N)


# ------------------------------------------------------------------ Pallas kernel
def wav2fft_kernel(frames_ref, whi_ref, wlo_ref, out_ref, *, inv_n, energy_floor_log):
    x = frames_ref[...]                                        # (TILE_M, N) f32

    # remove DC offset
    xc = x - jnp.sum(x, axis=-1, keepdims=True) * inv_n

    # raw log-energy on DC-removed frame, clamped at log(energy_floor)
    log_e = jnp.log(jnp.sum(xc * xc, axis=-1, keepdims=True) + 1e-15)
    log_e = jnp.maximum(log_e, energy_floor_log)               # (TILE_M, 1)

    # split f32 frame into bf16 hi/lo -> 3 single-pass bf16 MXU matmuls (~fp32 accuracy).
    # (On v5e the `x_lo @ w_hi` pass may be dropped for a 2-pass scheme if ~1e-3 rel err is ok.)
    x_hi = xc.astype(jnp.bfloat16)
    x_lo = (xc - x_hi.astype(jnp.float32)).astype(jnp.bfloat16)
    w_hi = whi_ref[...]                                        # (N, OUT_W) bf16
    w_lo = wlo_ref[...]

    out = jnp.dot(x_hi, w_hi, preferred_element_type=jnp.float32)
    out = out + jnp.dot(x_lo, w_hi, preferred_element_type=jnp.float32)
    out = out + jnp.dot(x_hi, w_lo, preferred_element_type=jnp.float32)

    out_ref[...] = out                                         # single lane-dense store
    out_ref[:, 0:1] = log_e                                    # narrow VMEM store: real DC bin = logE


# ------------------------------------------------------------------ wrapper
def wav2fft(x, *, sampling_rate=8000, frame_length=0.025, frame_shift=0.01,
            preemph_coeff=0.97, energy_floor=EPSILON, tile_m=1024):
    x = x.astype(jnp.float32)
    B, _ = x.shape
    N = int(math.floor(frame_length * sampling_rate))
    shift = int(math.floor(frame_shift * sampling_rate))
    n_fft = next_power_of_2(N)
    K = n_fft // 2 + 1
    OUT_W = max(128, _round_up(2 * K - 2, 128))                # lane-dense compact output width

    frames = frame_signal(x, N, shift)                         # (B, T, N)
    T = frames.shape[1]
    M_total = B * T

    # flatten (B, T) -> frame axis and tile it for the MXU
    if M_total <= tile_m:
        TILE_M = max(16, _round_up(M_total, 16))               # 16: bf16 sublane packing
        M_pad = TILE_M
    else:
        TILE_M = tile_m
        # keep >= 4 grid steps so both v7x TensorCores get work on the "parallel" axis
        while TILE_M > 256 and _round_up(M_total, TILE_M) // TILE_M < 4:
            TILE_M //= 2
        M_pad = _round_up(M_total, TILE_M)
    frames_flat = frames.reshape(M_total, N)
    if M_pad != M_total:
        frames_flat = jnp.pad(frames_flat, ((0, M_pad - M_total), (0, 0)))

    # folded DFT weights (pre-emphasis + window + zero-pad + imag sign), split into bf16 hi/lo
    Wf = jnp.asarray(build_folded_dft(N, n_fft, OUT_W, preemph_coeff))   # (N, OUT_W) f32
    W_hi = Wf.astype(jnp.bfloat16)
    W_lo = (Wf - W_hi.astype(jnp.float32)).astype(jnp.bfloat16)

    kernel = functools.partial(
        wav2fft_kernel,
        inv_n=1.0 / N,
        energy_floor_log=math.log(energy_floor) if energy_floor > 0.0 else float("-inf"))

    out = pl.pallas_call(
        kernel,
        out_shape=jax.ShapeDtypeStruct((M_pad, OUT_W), jnp.float32),
        grid=(M_pad // TILE_M,),
        in_specs=[
            pl.BlockSpec((TILE_M, N), lambda i: (i, 0)),           # frame tile
            pl.BlockSpec((N, OUT_W), lambda i: (0, 0)),            # folded DFT (hi) — VMEM-resident
            pl.BlockSpec((N, OUT_W), lambda i: (0, 0)),            # folded DFT (lo) — VMEM-resident
        ],
        out_specs=pl.BlockSpec((TILE_M, OUT_W), lambda i: (i, 0)),
        compiler_params=pltpu.CompilerParams(
            dimension_semantics=("parallel",),
            vmem_limit_bytes=32 * 1024 * 1024),
    )(frames_flat, W_hi, W_lo)

    # ---- minimal epilogue: one fused slice/pad/complex pass ----
    if M_pad != M_total:
        out = out[:M_total]
    out = out.reshape(B, T, OUT_W)
    real = out[..., :K]                                        # col 0 already holds log-energy
    imag = jnp.pad(out[..., K:2 * K - 2], ((0, 0), (0, 0), (1, 1)))   # imag bins 0 & K-1 are exact 0
    # TODO(synk): complex64 assembly has no Pallas equivalent (no complex dtype on TPU kernels);
    # done here as a single fused XLA op.
    return jax.lax.complex(real, imag)                         # (B, T, K) complex64


# ------------------------------------------------------------------ pure-JAX reference
def wav2fft_ref(x, *, sampling_rate=8000, frame_length=0.025, frame_shift=0.01,
                preemph_coeff=0.97, energy_floor=EPSILON):
    x = x.astype(jnp.float32)
    N = int(math.floor(frame_length * sampling_rate))
    shift = int(math.floor(frame_shift * sampling_rate))
    n_fft = next_power_of_2(N)
    f = frame_signal(x, N, shift)
    f = f - jnp.mean(f, axis=-1, keepdims=True)
    log_e = jnp.maximum(jnp.log(jnp.sum(f * f, axis=-1) + 1e-15),
                        math.log(energy_floor))
    f_prev = jnp.concatenate([f[:, :, :1], f[:, :, :-1]], axis=-1)
    f = f - preemph_coeff * f_prev
    f = f * jnp.asarray(povey_window_np(N), dtype=jnp.float32)
    f = jnp.pad(f, ((0, 0), (0, 0), (0, n_fft - N)))
    X = jnp.fft.rfft(f, axis=-1).astype(jnp.complex64)
    X = X.at[:, :, 0].set(log_e.astype(jnp.complex64))
    return X


# ------------------------------------------------------------------ main
if __name__ == "__main__":
    key = jax.random.PRNGKey(0)
    B, S = 2, 800        # sampling_rate=8000 -> N=200, shift=80, n_fft=256, K=129, T=10
    x = jax.random.normal(key, (B, S), dtype=jnp.float32)

    out = wav2fft(x)
    out = jax.block_until_ready(out)

    ref = jax.block_until_ready(wav2fft_ref(x))
    assert out.shape == ref.shape and out.dtype == jnp.complex64
    np.testing.assert_allclose(np.asarray(out), np.asarray(ref), rtol=1e-2, atol=1e-2)

    print("KERNEL_OK")
</pallas_src>

<mosaic_0001>
module attributes {stable_mosaic.version = 11 : i64} {
  func.func @wav2fft_kernel(%arg0: i32, %arg1: memref<32x200xf32, #tpu.memory_space<vmem>>, %arg2: memref<200x256xbf16, #tpu.memory_space<vmem>>, %arg3: memref<200x256xbf16, #tpu.memory_space<vmem>>, %arg4: memref<32x256xf32, #tpu.memory_space<vmem>>) attributes {dimension_semantics = [#tpu.dimension_semantics<parallel>], iteration_bounds = array<i64: 1>, scalar_prefetch = 0 : i64, scratch_operands = 0 : i64, tpu.core_type = #tpu.core_type<tc>, window_params = [{transform_indices = @transform_0, window_bounds = array<i64: 32, 200>}, {pipeline_mode = #tpu.pipeline_mode<synchronous>, transform_indices = @transform_1, window_bounds = array<i64: 200, 256>}, {pipeline_mode = #tpu.pipeline_mode<synchronous>, transform_indices = @transform_2, window_bounds = array<i64: 200, 256>}, {transform_indices = @transform_3, window_bounds = array<i64: 32, 256>}]} {
    %c0 = arith.constant 0 : index
    %c0_0 = arith.constant 0 : index
    %0 = vector.load %arg1[%c0, %c0_0] : memref<32x200xf32, #tpu.memory_space<vmem>>, vector<32x200xf32>
    %cst = arith.constant dense<0.000000e+00> : vector<32xf32>
    %1 = vector.multi_reduction <add>, %0, %cst [1] : vector<32x200xf32> to vector<32xf32>
    %2 = vector.shape_cast %1 : vector<32xf32> to vector<32x1xf32>
    %cst_1 = arith.constant 5.000000e-03 : f32
    %3 = vector.broadcast %cst_1 : f32 to vector<32x1xf32>
    %4 = arith.mulf %2, %3 : vector<32x1xf32>
    %5 = vector.broadcast %4 : vector<32x1xf32> to vector<32x200xf32>
    %6 = arith.subf %0, %5 : vector<32x200xf32>
    %7 = arith.mulf %6, %6 : vector<32x200xf32>
    %cst_2 = arith.constant dense<0.000000e+00> : vector<32xf32>
    %8 = vector.multi_reduction <add>, %7, %cst_2 [1] : vector<32x200xf32> to vector<32xf32>
    %9 = vector.shape_cast %8 : vector<32xf32> to vector<32x1xf32>
    %cst_3 = arith.constant 1.000000e-15 : f32
    %10 = vector.broadcast %cst_3 : f32 to vector<32x1xf32>
    %11 = arith.addf %9, %10 : vector<32x1xf32>
    %12 = math.log %11 : vector<32x1xf32>
    %cst_4 = arith.constant -23.0258503 : f32
    %13 = vector.broadcast %cst_4 : f32 to vector<32x1xf32>
    %14 = arith.maximumf %12, %13 : vector<32x1xf32>
    %15 = arith.truncf %6 : vector<32x200xf32> to vector<32x200xbf16>
    %16 = arith.extf %15 : vector<32x200xbf16> to vector<32x200xf32>
    %17 = arith.subf %6, %16 : vector<32x200xf32>
    %18 = arith.truncf %17 : vector<32x200xf32> to vector<32x200xbf16>
    %c0_5 = arith.constant 0 : index
    %c0_6 = arith.constant 0 : index
    %19 = vector.load %arg2[%c0_5, %c0_6] : memref<200x256xbf16, #tpu.memory_space<vmem>>, vector<200x256xbf16>
    %c0_7 = arith.constant 0 : index
    %c0_8 = arith.constant 0 : index
    %20 = vector.load %arg3[%c0_7, %c0_8] : memref<200x256xbf16, #tpu.memory_space<vmem>>, vector<200x256xbf16>
    %cst_9 = arith.constant dense<0.000000e+00> : vector<32x256xf32>
    %21 = tpu.matmul %15, %19, %cst_9 {dimension_numbers = #tpu.dot_dimension_numbers<[1], [0], [0], [1], [0, 0, 1, 1], [], []>} : vector<32x200xbf16>, vector<200x256xbf16>, vector<32x256xf32> -> vector<32x256xf32>
    %cst_10 = arith.constant dense<0.000000e+00> : vector<32x256xf32>
    %22 = tpu.matmul %18, %19, %cst_10 {dimension_numbers = #tpu.dot_dimension_numbers<[1], [0], [0], [1], [0, 0, 1, 1], [], []>} : vector<32x200xbf16>, vector<200x256xbf16>, vector<32x256xf32> -> vector<32x256xf32>
    %23 = arith.addf %21, %22 : vector<32x256xf32>
    %cst_11 = arith.constant dense<0.000000e+00> : vector<32x256xf32>
    %24 = tpu.matmul %15, %20, %cst_11 {dimension_numbers = #tpu.dot_dimension_numbers<[1], [0], [0], [1], [0, 0, 1, 1], [], []>} : vector<32x200xbf16>, vector<200x256xbf16>, vector<32x256xf32> -> vector<32x256xf32>
    %25 = arith.addf %23, %24 : vector<32x256xf32>
    %c0_12 = arith.constant 0 : index
    %c0_13 = arith.constant 0 : index
    %26 = vector.load %arg4[%c0_12, %c0_13] : memref<32x256xf32, #tpu.memory_space<vmem>>, vector<32x256xf32>
    tpu.vector_store %arg4[%c0_12, %c0_13], %25 {strides = array<i32>} : memref<32x256xf32, #tpu.memory_space<vmem>>, vector<32x256xf32>,
    %c0_14 = arith.constant 0 : index
    %c0_15 = arith.constant 0 : index
    %27 = vector.load %arg4[%c0_14, %c0_15] : memref<32x256xf32, #tpu.memory_space<vmem>>, vector<32x1xf32>
    tpu.vector_store %arg4[%c0_14, %c0_15], %14 {strides = array<i32>} : memref<32x256xf32, #tpu.memory_space<vmem>>, vector<32x1xf32>,
    return
  }
  func.func @transform_0(%arg0: i32) -> (i32, i32) {
    %c0_i32 = arith.constant 0 : i32
    %c0_i32_0 = arith.constant 0 : i32
    return %arg0, %c0_i32 : i32, i32
  }
  func.func @transform_1(%arg0: i32) -> (i32, i32) {
    %c0_i32 = arith.constant 0 : i32
    %c0_i32_0 = arith.constant 0 : i32
    %c0_i32_1 = arith.constant 0 : i32
    return %c0_i32, %c0_i32_0 : i32, i32
  }
  func.func @transform_2(%arg0: i32) -> (i32, i32) {
    %c0_i32 = arith.constant 0 : i32
    %c0_i32_0 = arith.constant 0 : i32
    %c0_i32_1 = arith.constant 0 : i32
    return %c0_i32, %c0_i32_0 : i32, i32
  }
  func.func @transform_3(%arg0: i32) -> (i32, i32) {
    %c0_i32 = arith.constant 0 : i32
    %c0_i32_0 = arith.constant 0 : i32
    return %arg0, %c0_i32 : i32, i32
  }
}

</mosaic_0001>

<llo_original>
// kernel: tpu_custom_call.1
$region0: #{tpu_custom_call.1}
  #allocation0 [shape = 'u32[]', space=smem, size = 0x4, offset = 0x4, fixed_abs, tag = 'smem constant byte address 0x4 - core index']
  #allocation1 [shape = 'u32[144,128]{1,0:T(1,128)}', space=vmem, size = 0x12000, scoped, tag = 'internal scratch']
  %s0 = inlined_call_operand.hbm [shape: f32[32,200], index: 0, kind: input, shape index: {}]
  %s1 = inlined_call_operand.hbm [shape: bf16[200,256], index: 1, kind: input, shape index: {}]
  %s2 = inlined_call_operand.hbm [shape: bf16[200,256], index: 2, kind: input, shape index: {}]
  %s3 = inlined_call_operand.hbm [shape: f32[32,256], index: 3, kind: output, shape index: {}]
  %s4 = sld [smem:[#allocation0]]
  $region34: #{tpu_custom_call.1} parent=0
    _
  %s6 = ssub.s32 1, %s4
  %s7 = scalar_select 0, %s6, %s4
  $region1: #{tpu_custom_call.1} parent=0
    #allocation2 [shape = 'u8[32768]{0}', space=vmem, size = 0x8000, scoped, tag = 'input window, operand 0, single buffered']
    #allocation3 [shape = 's32[1]{0}', space=sflag, size = 0x4, scoped, tag = 'scoped memory for tpu_custom_call.1']
    #allocation4 [shape = 's32[1]{0}', space=sflag, size = 0x4, scoped, tag = 'scoped memory for tpu_custom_call.1']
    #allocation5 [shape = 'u8[102400]{0}', space=vmem, size = 0x19000, scoped, tag = 'input window, operand 1, single buffered']
    #allocation6 [shape = 's32[1]{0}', space=sflag, size = 0x4, scoped, tag = 'scoped memory for tpu_custom_call.1']
    #allocation7 [shape = 'u8[102400]{0}', space=vmem, size = 0x19000, scoped, tag = 'input window, operand 2, single buffered']
    #allocation8 [shape = 'u8[32768]{0}', space=vmem, size = 0x8000, scoped, tag = 'output window, operand 0, single buffered']
    %8 = vsyncpa [#allocation3], 0
    %9 = vsyncpa [#allocation6], 0
    %10 = vsyncpa [#allocation4], 0
    // Predicated region
    $region2: #{tpu_custom_call.1} parent=1 // pred_check
      _
    $region3: #{tpu_custom_call.1} parent=1 // pred_check_branch
      %12 = sbr.rel (0) target = $region5
    $region4: #{tpu_custom_call.1} parent=1 // pred_region
      %s14 = ssub.s32 1024, 1024
      %15 = vsyncadd [#allocation3], %s14
      %s16 = sshll.u32 [#allocation2], 4
      %s17 = int_to_ptr.vmem [resolvable:$true] %s16
      %22 = dma.hbm_to_vmem [thread:$0]  %s0, 1024, %s17, [#allocation3], 256, 256, 16
    $region5: #{tpu_custom_call.1} parent=1 // pred_fallthru
      _
    // Predicated region
    $region6: #{tpu_custom_call.1} parent=1 // pred_check
      _
    $region7: #{tpu_custom_call.1} parent=1 // pred_check_branch
      %24 = sbr.rel (0) target = $region9
    $region8: #{tpu_custom_call.1} parent=1 // pred_region
      %s26 = ssub.s32 3200, 3200
      %27 = vsyncadd [#allocation6], %s26
      %s28 = sshll.u32 [#allocation5], 4
      %s29 = int_to_ptr.vmem [resolvable:$true] %s28
      %34 = dma.hbm_to_vmem [thread:$0]  %s1, 3200, %s29, [#allocation6], 128, 128, 8
    $region9: #{tpu_custom_call.1} parent=1 // pred_fallthru
      _
    // Predicated region
    $region10: #{tpu_custom_call.1} parent=1 // pred_check
      _
    $region11: #{tpu_custom_call.1} parent=1 // pred_check_branch
      %36 = sbr.rel (0) target = $region13
    $region12: #{tpu_custom_call.1} parent=1 // pred_region
      %s38 = ssub.s32 3200, 3200
      %39 = vsyncadd [#allocation6], %s38
      %s40 = sshll.u32 [#allocation7], 4
      %s41 = int_to_ptr.vmem [resolvable:$true] %s40
      %46 = dma.hbm_to_vmem [thread:$0]  %s2, 3200, %s41, [#allocation6], 128, 128, 8
    $region13: #{tpu_custom_call.1} parent=1 // pred_fallthru
      _
    // Predicated region
    $region14: #{tpu_custom_call.1} parent=1 // pred_check
      _
    $region15: #{tpu_custom_call.1} parent=1 // pred_check_branch
      %48 = sbr.rel (0) target = $region17
    $region16: #{tpu_custom_call.1} parent=1 // pred_region
      %49 = dma.done [#allocation3], 1024
    $region17: #{tpu_custom_call.1} parent=1 // pred_fallthru
      _
    // Predicated region
    $region18: #{tpu_custom_call.1} parent=1 // pred_check
      _
    $region19: #{tpu_custom_call.1} parent=1 // pred_check_branch
      %51 = sbr.rel (0) target = $region21
    $region20: #{tpu_custom_call.1} parent=1 // pred_region
      %52 = dma.done [#allocation6], 3200
    $region21: #{tpu_custom_call.1} parent=1 // pred_fallthru
      _
    // Predicated region
    $region22: #{tpu_custom_call.1} parent=1 // pred_check
      _
    $region23: #{tpu_custom_call.1} parent=1 // pred_check_branch
      %54 = sbr.rel (0) target = $region25
    $region24: #{tpu_custom_call.1} parent=1 // pred_region
      %55 = dma.done [#allocation6], 3200
    $region25: #{tpu_custom_call.1} parent=1 // pred_fallthru
      _
    %v57 = vld [vmem:[#allocation2] sm:$0xff]
    %v58 = vld [vmem:[#allocation2 + $0x8] sm:$0xff]
    %v59 = vld [vmem:[#allocation2 + $0x10] sm:$0xff]
    %v60 = vld [vmem:[#allocation2 + $0x18] sm:$0xff]
    %v61 = vld [vmem:[#allocation2 + $0x20] sm:$0xff]
    %v62 = vld [vmem:[#allocation2 + $0x28] sm:$0xff]
    %v63 = vld [vmem:[#allocation2 + $0x30] sm:$0xff]
    %v64 = vld [vmem:[#allocation2 + $0x38] sm:$0xff]
    %vm65 = vcmask 588800
    %v66 = vsel %vm65, %v58, 0.0
    %v67 = vadd.f32 %v57, %v66
    %68 = vadd.xlane.f32.xlu0 %v67
    %v69 = vpop.xlane.xlu0 %68
    %v70 = vsel %vm65, %v60, 0.0
    %v71 = vadd.f32 %v59, %v70
    %72 = vadd.xlane.f32.xlu0 %v71
    %v73 = vpop.xlane.xlu0 %72
    %v74 = vsel %vm65, %v62, 0.0
    %v75 = vadd.f32 %v61, %v74
    %76 = vadd.xlane.f32.xlu0 %v75
    %v77 = vpop.xlane.xlu0 %76
    %v78 = vsel %vm65, %v64, 0.0
    %v79 = vadd.f32 %v63, %v78
    %80 = vadd.xlane.f32.xlu0 %v79
    %v81 = vpop.xlane.xlu0 %80
    %v82 = vmul.f32 %v69, 0.005
    %v83 = vmul.f32 %v73, 0.005
    %v84 = vmul.f32 %v77, 0.005
    %v85 = vmul.f32 %v81, 0.005
    %v86 = vsub.f32 %v57, %v82
    %v87 = vsub.f32 %v58, %v82
    %v88 = vsub.f32 %v59, %v83
    %v89 = vsub.f32 %v60, %v83
    %v90 = vsub.f32 %v61, %v84
    %v91 = vsub.f32 %v62, %v84
    %v92 = vsub.f32 %v63, %v85
    %v93 = vsub.f32 %v64, %v85
    %v94 = vmul.f32 %v86, %v86
    %v95 = vmul.f32 %v87, %v87
    %v96 = vmul.f32 %v88, %v88
    %v97 = vmul.f32 %v89, %v89
    %v98 = vmul.f32 %v90, %v90
    %v99 = vmul.f32 %v91, %v91
    %v100 = vmul.f32 %v92, %v92
    %v101 = vmul.f32 %v93, %v93
    %v102 = vsel %vm65, %v95, 0.0
    %v103 = vadd.f32 %v94, %v102
    %104 = vadd.xlane.f32.xlu0 %v103
    %v105 = vpop.xlane.xlu0 %104
    %v106 = vsel %vm65, %v97, 0.0
    %v107 = vadd.f32 %v96, %v106
    %108 = vadd.xlane.f32.xlu0 %v107
    %v109 = vpop.xlane.xlu0 %108
    %v110 = vsel %vm65, %v99, 0.0
    %v111 = vadd.f32 %v98, %v110
    %112 = vadd.xlane.f32.xlu0 %v111
    %v113 = vpop.xlane.xlu0 %112
    %v114 = vsel %vm65, %v101, 0.0
    %v115 = vadd.f32 %v100, %v114
    %116 = vadd.xlane.f32.xlu0 %v115
    %v117 = vpop.xlane.xlu0 %116
    %v118 = vadd.f32 %v105, 1e-15
    %v119 = vadd.f32 %v109, 1e-15
    %v120 = vadd.f32 %v113, 1e-15
    %v121 = vadd.f32 %v117, 1e-15
    %v122 = vlog2.pop %v118
    %v123 = vmul.f32 %v122, 0.6931472
    %v124 = vlog2.pop %v119
    %v125 = vmul.f32 %v124, 0.6931472
    %v126 = vlog2.pop %v120
    %v127 = vmul.f32 %v126, 0.6931472
    %v128 = vlog2.pop %v121
    %v129 = vmul.f32 %v128, 0.6931472
    %v130 = vmax.f32 %v123, -23.02585
    %v131 = vmax.f32 %v125, -23.02585
    %v132 = vmax.f32 %v127, -23.02585
    %v133 = vmax.f32 %v129, -23.02585
    %v134 = vpack.c.bf16 %v88, %v86
    %v135 = vpack.c.bf16 %v89, %v87
    %v136 = vpack.c.bf16 %v92, %v90
    %v137 = vpack.c.bf16 %v93, %v91
    %v138 = vunpack.c.l.bf16 %v134
    %v139 = vunpack.c.l.bf16 %v135
    %v140 = vunpack.c.h.bf16 %v134
    %v141 = vunpack.c.h.bf16 %v135
    %v142 = vunpack.c.l.bf16 %v136
    %v143 = vunpack.c.l.bf16 %v137
    %v144 = vunpack.c.h.bf16 %v136
    %v145 = vunpack.c.h.bf16 %v137
    %v146 = vsub.f32 %v86, %v138
    %v147 = vsub.f32 %v87, %v139
    %v148 = vsub.f32 %v88, %v140
    %v149 = vsub.f32 %v89, %v141
    %v150 = vsub.f32 %v90, %v142
    %v151 = vsub.f32 %v91, %v143
    %v152 = vsub.f32 %v92, %v144
    %v153 = vsub.f32 %v93, %v145
    %v154 = vpack.c.bf16 %v148, %v146
    %v155 = vpack.c.bf16 %v149, %v147
    %v156 = vpack.c.bf16 %v152, %v150
    %v157 = vpack.c.bf16 %v153, %v151
    %v158 = vld [vmem:[#allocation5] sm:$0xff]
    %v159 = vld [vmem:[#allocation5 + $0x8] sm:$0xff]
    %v160 = vld [vmem:[#allocation5 + $0x10] sm:$0xff]
    %v161 = vld [vmem:[#allocation5 + $0x18] sm:$0xff]
    %v162 = vld [vmem:[#allocation5 + $0x20] sm:$0xff]
    %v163 = vld [vmem:[#allocation5 + $0x28] sm:$0xff]
    %v164 = vld [vmem:[#allocation5 + $0x30] sm:$0xff]
    %v165 = vld [vmem:[#allocation5 + $0x38] sm:$0xff]
    %v166 = vld [vmem:[#allocation5 + $0x40] sm:$0xff]
    %v167 = vld [vmem:[#allocation5 + $0x48] sm:$0xff]
    %v168 = vld [vmem:[#allocation5 + $0x50] sm:$0xff]
    %v169 = vld [vmem:[#allocation5 + $0x58] sm:$0xff]
    %v170 = vld [vmem:[#allocation5 + $0x60] sm:$0xff]
    %v171 = vld [vmem:[#allocation5 + $0x68] sm:$0xff]
    %v172 = vld [vmem:[#allocation5 + $0x70] sm:$0xff]
    %v173 = vld [vmem:[#allocation5 + $0x78] sm:$0xff]
    %v174 = vld [vmem:[#allocation5 + $0x80] sm:$0xff]
    %v175 = vld [vmem:[#allocation5 + $0x88] sm:$0xff]
    %v176 = vld [vmem:[#allocation5 + $0x90] sm:$0xff]
    %v177 = vld [vmem:[#allocation5 + $0x98] sm:$0xff]
    %v178 = vld [vmem:[#allocation5 + $0xa0] sm:$0xff]
    %v179 = vld [vmem:[#allocation5 + $0xa8] sm:$0xff]
    %v180 = vld [vmem:[#allocation5 + $0xb0] sm:$0xff]
    %v181 = vld [vmem:[#allocation5 + $0xb8] sm:$0xff]
    %v182 = vld [vmem:[#allocation5 + $0xc0] sm:$0xff]
    %v183 = vld [vmem:[#allocation7] sm:$0xff]
    %v184 = vld [vmem:[#allocation7 + $0x8] sm:$0xff]
    %v185 = vld [vmem:[#allocation7 + $0x10] sm:$0xff]
    %v186 = vld [vmem:[#allocation7 + $0x18] sm:$0xff]
    %v187 = vld [vmem:[#allocation7 + $0x20] sm:$0xff]
    %v188 = vld [vmem:[#allocation7 + $0x28] sm:$0xff]
    %v189 = vld [vmem:[#allocation7 + $0x30] sm:$0xff]
    %v190 = vld [vmem:[#allocation7 + $0x38] sm:$0xff]
    %v191 = vld [vmem:[#allocation7 + $0x40] sm:$0xff]
    %v192 = vld [vmem:[#allocation7 + $0x48] sm:$0xff]
    %v193 = vld [vmem:[#allocation7 + $0x50] sm:$0xff]
    %v194 = vld [vmem:[#allocation7 + $0x58] sm:$0xff]
    %v195 = vld [vmem:[#allocation7 + $0x60] sm:$0xff]
    %v196 = vld [vmem:[#allocation7 + $0x68] sm:$0xff]
    %v197 = vld [vmem:[#allocation7 + $0x70] sm:$0xff]
    %v198 = vld [vmem:[#allocation7 + $0x78] sm:$0xff]
    %v199 = vld [vmem:[#allocation7 + $0x80] sm:$0xff]
    %v200 = vld [vmem:[#allocation7 + $0x88] sm:$0xff]
    %v201 = vld [vmem:[#allocation7 + $0x90] sm:$0xff]
    %v202 = vld [vmem:[#allocation7 + $0x98] sm:$0xff]
    %v203 = vld [vmem:[#allocation7 + $0xa0] sm:$0xff]
    %v204 = vld [vmem:[#allocation7 + $0xa8] sm:$0xff]
    %v205 = vld [vmem:[#allocation7 + $0xb0] sm:$0xff]
    %v206 = vld [vmem:[#allocation7 + $0xb8] sm:$0xff]
    %v207 = vld [vmem:[#allocation7 + $0xc0] sm:$0xff]
    %v233 = vunpack.c.l.b16 %v158
    %v234 = vunpack.c.h.b16 %v158
    %v235 = vunpack.c.l.b16 %v159
    %v236 = vunpack.c.h.b16 %v159
    %v237 = vunpack.c.l.b16 %v160
    %v238 = vunpack.c.h.b16 %v160
    %v239 = vunpack.c.l.b16 %v161
    %v240 = vunpack.c.h.b16 %v161
    %v241 = vunpack.c.l.b16 %v162
    %v242 = vunpack.c.h.b16 %v162
    %v243 = vunpack.c.l.b16 %v163
    %v244 = vunpack.c.h.b16 %v163
    %v245 = vunpack.c.l.b16 %v164
    %v246 = vunpack.c.h.b16 %v164
    %v247 = vunpack.c.l.b16 %v165
    %v248 = vunpack.c.h.b16 %v165
    %v249 = vunpack.c.l.b16 %v166
    %v250 = vunpack.c.h.b16 %v166
    %v251 = vunpack.c.l.b16 %v167
    %v252 = vunpack.c.h.b16 %v167
    %v253 = vunpack.c.l.b16 %v168
    %v254 = vunpack.c.h.b16 %v168
    %v255 = vunpack.c.l.b16 %v169
    %v256 = vunpack.c.h.b16 %v169
    %v257 = vunpack.c.l.b16 %v170
    %v258 = vunpack.c.h.b16 %v170
    %v259 = vunpack.c.l.b16 %v171
    %v260 = vunpack.c.h.b16 %v171
    %v261 = vunpack.c.l.b16 %v172
    %v262 = vunpack.c.h.b16 %v172
    %v263 = vunpack.c.l.b16 %v173
    %v264 = vunpack.c.h.b16 %v173
    %v265 = vunpack.c.l.b16 %v174
    %v266 = vunpack.c.h.b16 %v174
    %v267 = vunpack.c.l.b16 %v175
    %v268 = vunpack.c.h.b16 %v175
    %v269 = vunpack.c.l.b16 %v176
    %v270 = vunpack.c.h.b16 %v176
    %v271 = vunpack.c.l.b16 %v177
    %v272 = vunpack.c.h.b16 %v177
    %v273 = vunpack.c.l.b16 %v178
    %v274 = vunpack.c.h.b16 %v178
    %v275 = vunpack.c.l.b16 %v179
    %v276 = vunpack.c.h.b16 %v179
    %v277 = vunpack.c.l.b16 %v180
    %v278 = vunpack.c.h.b16 %v180
    %v279 = vunpack.c.l.b16 %v181
    %v280 = vunpack.c.h.b16 %v181
    %v281 = vunpack.c.l.b16 %v182
    %v282 = vunpack.c.h.b16 %v182
    %v283 = vpack.c.b16 %v235, %v233
    %v284 = vpack.c.b16 %v236, %v234
    %v285 = vpack.c.b16 %v239, %v237
    %v286 = vpack.c.b16 %v240, %v238
    %v287 = vpack.c.b16 %v243, %v241
    %v288 = vpack.c.b16 %v244, %v242
    %v289 = vpack.c.b16 %v247, %v245
    %v290 = vpack.c.b16 %v248, %v246
    %v291 = vpack.c.b16 %v251, %v249
    %v292 = vpack.c.b16 %v252, %v250
    %v293 = vpack.c.b16 %v255, %v253
    %v294 = vpack.c.b16 %v256, %v254
    %v295 = vpack.c.b16 %v259, %v257
    %v296 = vpack.c.b16 %v260, %v258
    %v297 = vpack.c.b16 %v263, %v261
    %v298 = vpack.c.b16 %v264, %v262
    %v299 = vpack.c.b16 %v267, %v265
    %v300 = vpack.c.b16 %v268, %v266
    %v301 = vpack.c.b16 %v271, %v269
    %v302 = vpack.c.b16 %v272, %v270
    %v303 = vpack.c.b16 %v275, %v273
    %v304 = vpack.c.b16 %v276, %v274
    %v305 = vpack.c.b16 %v279, %v277
    %v306 = vpack.c.b16 %v280, %v278
    %v307 = vpack.c.b16 %v281, %v281
    %v308 = vpack.c.b16 %v282, %v282
    %v334 = vsel %vm65, %v155, 0
    %v337 = vsel %vm65, %v157, 0
    %vm339 = vcmask 1043456
    %v341 = vsel %vm339, %v307, 0
    %v344 = vsel %vm339, %v308, 0
    %346 = vmatprep.subr.bf16.mxu0 %v284
    %347 = vmatpush1.bf16.msra.mxu0 %v283
    %348 = vmatprep.subr.bf16.mxu0 %v286
    %349 = vmatpush1.bf16.msra.mxu0 %v285
    %350 = vmatprep.subr.bf16.mxu0 %v288
    %351 = vmatpush1.bf16.msra.mxu0 %v287
    %352 = vmatprep.subr.bf16.mxu0 %v290
    %353 = vmatpush1.bf16.msra.mxu0 %v289
    %354 = vmatprep.subr.bf16.mxu0 %v292
    %355 = vmatpush1.bf16.msra.mxu0 %v291
    %356 = vmatprep.subr.bf16.mxu0 %v294
    %357 = vmatpush1.bf16.msra.mxu0 %v293
    %358 = vmatprep.subr.bf16.mxu0 %v296
    %359 = vmatpush1.bf16.msra.mxu0 %v295
    %360 = vmatprep.subr.bf16.mxu0 %v298
    %361 = vmatpush1.bf16.msra.mxu0 %v297
    %362 = vmatprep.subr.bf16.mxu0 %v300
    %363 = vmatpush1.bf16.msra.mxu0 %v299
    %364 = vmatprep.subr.bf16.mxu0 %v302
    %365 = vmatpush1.bf16.msra.mxu0 %v301
    %366 = vmatprep.subr.bf16.mxu0 %v304
    %367 = vmatpush1.bf16.msra.mxu0 %v303
    %368 = vmatprep.subr.bf16.mxu0 %v306
    %369 = vmatpush1.bf16.msra.mxu0 %v305
    %370 = vmatprep.subr.bf16.mxu0 %v344
    %371 = vmatpush1.bf16.msra.mxu0 %v341
    %372 = vmatprep.subr.bf16.mxu0 0
    %373 = vmatpush1.bf16.msra.mxu0 0
    %374 = vmatprep.subr.bf16.mxu0 0
    %375 = vmatpush1.bf16.msra.mxu0 0
    %376 = vmatprep.subr.bf16.mxu0 0
    %377 = vmatpush1.bf16.msra.mxu0 0
    %378 = vmatprep.mubr.bf16.mxu0 %v334
    %379 = vmatmul.mubr.bf16.gmra.mrb[0].mxu0 %v154
    %v380 = vpop.f32.mrb[0].mxu0
    %v381 = vadd.f32 0.0, %v380
    %v382 = vpop.f32.mrb[0].mxu0
    %v383 = vadd.f32 0.0, %v382
    %v384 = vpop.f32.mrb[0].mxu0
    %v385 = vadd.f32 0.0, %v384
    %v386 = vpop.f32.mrb[0].mxu0
    %v387 = vadd.f32 0.0, %v386
    %388 = vmatprep.mubr.bf16.mxu0 %v337
    %389 = vmatmul.mubr.bf16.gmra.mrb[0].mxu0 %v156
    %v390 = vpop.f32.mrb[0].mxu0
    %v391 = vadd.f32 0.0, %v390
    %v392 = vpop.f32.mrb[0].mxu0
    %v393 = vadd.f32 0.0, %v392
    %v394 = vpop.f32.mrb[0].mxu0
    %v395 = vadd.f32 0.0, %v394
    %v396 = vpop.f32.mrb[0].mxu0
    %v397 = vadd.f32 0.0, %v396
    %398 = vdwg.mxu0
    %v400 = vsel %vm65, %v135, 0
    %v403 = vsel %vm65, %v137, 0
    %405 = vmatprep.subr.bf16.mxu0 %v284
    %406 = vmatpush1.bf16.msra.mxu0 %v283
    %407 = vmatprep.subr.bf16.mxu0 %v286
    %408 = vmatpush1.bf16.msra.mxu0 %v285
    %409 = vmatprep.subr.bf16.mxu0 %v288
    %410 = vmatpush1.bf16.msra.mxu0 %v287
    %411 = vmatprep.subr.bf16.mxu0 %v290
    %412 = vmatpush1.bf16.msra.mxu0 %v289
    %413 = vmatprep.subr.bf16.mxu0 %v292
    %414 = vmatpush1.bf16.msra.mxu0 %v291
    %415 = vmatprep.subr.bf16.mxu0 %v294
    %416 = vmatpush1.bf16.msra.mxu0 %v293
    %417 = vmatprep.subr.bf16.mxu0 %v296
    %418 = vmatpush1.bf16.msra.mxu0 %v295
    %419 = vmatprep.subr.bf16.mxu0 %v298
    %420 = vmatpush1.bf16.msra.mxu0 %v297
    %421 = vmatprep.subr.bf16.mxu0 %v300
    %422 = vmatpush1.bf16.msra.mxu0 %v299
    %423 = vmatprep.subr.bf16.mxu0 %v302
    %424 = vmatpush1.bf16.msra.mxu0 %v301
    %425 = vmatprep.subr.bf16.mxu0 %v304
    %426 = vmatpush1.bf16.msra.mxu0 %v303
    %427 = vmatprep.subr.bf16.mxu0 %v306
    %428 = vmatpush1.bf16.msra.mxu0 %v305
    %429 = vmatprep.subr.bf16.mxu0 %v344
    %430 = vmatpush1.bf16.msra.mxu0 %v341
    %431 = vmatprep.subr.bf16.mxu0 0
    %432 = vmatpush1.bf16.msra.mxu0 0
    %433 = vmatprep.subr.bf16.mxu0 0
    %434 = vmatpush1.bf16.msra.mxu0 0
    %435 = vmatprep.subr.bf16.mxu0 0
    %436 = vmatpush1.bf16.msra.mxu0 0
    %437 = vmatprep.mubr.bf16.mxu0 %v400
    %438 = vmatmul.mubr.bf16.gmra.mrb[0].mxu0 %v134
    %v439 = vpop.f32.mrb[0].mxu0
    %v440 = vadd.f32 %v381, %v439
    %v441 = vpop.f32.mrb[0].mxu0
    %v442 = vadd.f32 %v383, %v441
    %v443 = vpop.f32.mrb[0].mxu0
    %v444 = vadd.f32 %v385, %v443
    %v445 = vpop.f32.mrb[0].mxu0
    %v446 = vadd.f32 %v387, %v445
    %447 = vmatprep.mubr.bf16.mxu0 %v403
    %448 = vmatmul.mubr.bf16.gmra.mrb[0].mxu0 %v136
    %v449 = vpop.f32.mrb[0].mxu0
    %v450 = vadd.f32 %v391, %v449
    %v451 = vpop.f32.mrb[0].mxu0
    %v452 = vadd.f32 %v393, %v451
    %v453 = vpop.f32.mrb[0].mxu0
    %v454 = vadd.f32 %v395, %v453
    %v455 = vpop.f32.mrb[0].mxu0
    %v456 = vadd.f32 %v397, %v455
    %457 = vdwg.mxu0
    %v483 = vunpack.c.l.b16 %v183
    %v484 = vunpack.c.h.b16 %v183
    %v485 = vunpack.c.l.b16 %v184
    %v486 = vunpack.c.h.b16 %v184
    %v487 = vunpack.c.l.b16 %v185
    %v488 = vunpack.c.h.b16 %v185
    %v489 = vunpack.c.l.b16 %v186
    %v490 = vunpack.c.h.b16 %v186
    %v491 = vunpack.c.l.b16 %v187
    %v492 = vunpack.c.h.b16 %v187
    %v493 = vunpack.c.l.b16 %v188
    %v494 = vunpack.c.h.b16 %v188
    %v495 = vunpack.c.l.b16 %v189
    %v496 = vunpack.c.h.b16 %v189
    %v497 = vunpack.c.l.b16 %v190
    %v498 = vunpack.c.h.b16 %v190
    %v499 = vunpack.c.l.b16 %v191
    %v500 = vunpack.c.h.b16 %v191
    %v501 = vunpack.c.l.b16 %v192
    %v502 = vunpack.c.h.b16 %v192
    %v503 = vunpack.c.l.b16 %v193
    %v504 = vunpack.c.h.b16 %v193
    %v505 = vunpack.c.l.b16 %v194
    %v506 = vunpack.c.h.b16 %v194
    %v507 = vunpack.c.l.b16 %v195
    %v508 = vunpack.c.h.b16 %v195
    %v509 = vunpack.c.l.b16 %v196
    %v510 = vunpack.c.h.b16 %v196
    %v511 = vunpack.c.l.b16 %v197
    %v512 = vunpack.c.h.b16 %v197
    %v513 = vunpack.c.l.b16 %v198
    %v514 = vunpack.c.h.b16 %v198
    %v515 = vunpack.c.l.b16 %v199
    %v516 = vunpack.c.h.b16 %v199
    %v517 = vunpack.c.l.b16 %v200
    %v518 = vunpack.c.h.b16 %v200
    %v519 = vunpack.c.l.b16 %v201
    %v520 = vunpack.c.h.b16 %v201
    %v521 = vunpack.c.l.b16 %v202
    %v522 = vunpack.c.h.b16 %v202
    %v523 = vunpack.c.l.b16 %v203
    %v524 = vunpack.c.h.b16 %v203
    %v525 = vunpack.c.l.b16 %v204
    %v526 = vunpack.c.h.b16 %v204
    %v527 = vunpack.c.l.b16 %v205
    %v528 = vunpack.c.h.b16 %v205
    %v529 = vunpack.c.l.b16 %v206
    %v530 = vunpack.c.h.b16 %v206
    %v531 = vunpack.c.l.b16 %v207
    %v532 = vunpack.c.h.b16 %v207
    %v533 = vpack.c.b16 %v485, %v483
    %v534 = vpack.c.b16 %v486, %v484
    %v535 = vpack.c.b16 %v489, %v487
    %v536 = vpack.c.b16 %v490, %v488
    %v537 = vpack.c.b16 %v493, %v491
    %v538 = vpack.c.b16 %v494, %v492
    %v539 = vpack.c.b16 %v497, %v495
    %v540 = vpack.c.b16 %v498, %v496
    %v541 = vpack.c.b16 %v501, %v499
    %v542 = vpack.c.b16 %v502, %v500
    %v543 = vpack.c.b16 %v505, %v503
    %v544 = vpack.c.b16 %v506, %v504
    %v545 = vpack.c.b16 %v509, %v507
    %v546 = vpack.c.b16 %v510, %v508
    %v547 = vpack.c.b16 %v513, %v511
    %v548 = vpack.c.b16 %v514, %v512
    %v549 = vpack.c.b16 %v517, %v515
    %v550 = vpack.c.b16 %v518, %v516
    %v551 = vpack.c.b16 %v521, %v519
    %v552 = vpack.c.b16 %v522, %v520
    %v553 = vpack.c.b16 %v525, %v523
    %v554 = vpack.c.b16 %v526, %v524
    %v555 = vpack.c.b16 %v529, %v527
    %v556 = vpack.c.b16 %v530, %v528
    %v557 = vpack.c.b16 %v531, %v531
    %v558 = vpack.c.b16 %v532, %v532
    %v584 = vsel %vm339, %v557, 0
    %v587 = vsel %vm339, %v558, 0
    %589 = vmatprep.subr.bf16.mxu0 %v534
    %590 = vmatpush1.bf16.msra.mxu0 %v533
    %591 = vmatprep.subr.bf16.mxu0 %v536
    %592 = vmatpush1.bf16.msra.mxu0 %v535
    %593 = vmatprep.subr.bf16.mxu0 %v538
    %594 = vmatpush1.bf16.msra.mxu0 %v537
    %595 = vmatprep.subr.bf16.mxu0 %v540
    %596 = vmatpush1.bf16.msra.mxu0 %v539
    %597 = vmatprep.subr.bf16.mxu0 %v542
    %598 = vmatpush1.bf16.msra.mxu0 %v541
    %599 = vmatprep.subr.bf16.mxu0 %v544
    %600 = vmatpush1.bf16.msra.mxu0 %v543
    %601 = vmatprep.subr.bf16.mxu0 %v546
    %602 = vmatpush1.bf16.msra.mxu0 %v545
    %603 = vmatprep.subr.bf16.mxu0 %v548
    %604 = vmatpush1.bf16.msra.mxu0 %v547
    %605 = vmatprep.subr.bf16.mxu0 %v550
    %606 = vmatpush1.bf16.msra.mxu0 %v549
    %607 = vmatprep.subr.bf16.mxu0 %v552
    %608 = vmatpush1.bf16.msra.mxu0 %v551
    %609 = vmatprep.subr.bf16.mxu0 %v554
    %610 = vmatpush1.bf16.msra.mxu0 %v553
    %611 = vmatprep.subr.bf16.mxu0 %v556
    %612 = vmatpush1.bf16.msra.mxu0 %v555
    %613 = vmatprep.subr.bf16.mxu0 %v587
    %614 = vmatpush1.bf16.msra.mxu0 %v584
    %615 = vmatprep.subr.bf16.mxu0 0
    %616 = vmatpush1.bf16.msra.mxu0 0
    %617 = vmatprep.subr.bf16.mxu0 0
    %618 = vmatpush1.bf16.msra.mxu0 0
    %619 = vmatprep.subr.bf16.mxu0 0
    %620 = vmatpush1.bf16.msra.mxu0 0
    %621 = vmatprep.mubr.bf16.mxu0 %v400
    %622 = vmatmul.mubr.bf16.gmra.mrb[0].mxu0 %v134
    %v623 = vpop.f32.mrb[0].mxu0
    %v624 = vadd.f32 0.0, %v623
    %v625 = vpop.f32.mrb[0].mxu0
    %v626 = vadd.f32 0.0, %v625
    %v627 = vpop.f32.mrb[0].mxu0
    %v628 = vadd.f32 0.0, %v627
    %v629 = vpop.f32.mrb[0].mxu0
    %v630 = vadd.f32 0.0, %v629
    %631 = vmatprep.mubr.bf16.mxu0 %v403
    %632 = vmatmul.mubr.bf16.gmra.mrb[0].mxu0 %v136
    %v633 = vpop.f32.mrb[0].mxu0
    %v634 = vadd.f32 0.0, %v633
    %v635 = vpop.f32.mrb[0].mxu0
    %v636 = vadd.f32 0.0, %v635
    %v637 = vpop.f32.mrb[0].mxu0
    %v638 = vadd.f32 0.0, %v637
    %v639 = vpop.f32.mrb[0].mxu0
    %v640 = vadd.f32 0.0, %v639
    %641 = vdwg.mxu0
    %v642 = vadd.f32 %v440, %v624
    %v643 = vadd.f32 %v442, %v626
    %v644 = vadd.f32 %v444, %v628
    %v645 = vadd.f32 %v446, %v630
    %v646 = vadd.f32 %v450, %v634
    %v647 = vadd.f32 %v452, %v636
    %v648 = vadd.f32 %v454, %v638
    %v649 = vadd.f32 %v456, %v640
    %650 = vst [vmem:[#allocation8] sm:$0xff] %v642
    %651 = vst [vmem:[#allocation8 + $0x8] sm:$0xff] %v643
    %652 = vst [vmem:[#allocation8 + $0x10] sm:$0xff] %v644
    %653 = vst [vmem:[#allocation8 + $0x18] sm:$0xff] %v645
    %654 = vst [vmem:[#allocation8 + $0x20] sm:$0xff] %v646
    %655 = vst [vmem:[#allocation8 + $0x28] sm:$0xff] %v647
    %656 = vst [vmem:[#allocation8 + $0x30] sm:$0xff] %v648
    %657 = vst [vmem:[#allocation8 + $0x38] sm:$0xff] %v649
    %vm658 = vcmask 7168
    %659 = vst.msk [vmem:[#allocation8] sm:$0xff] %vm658, %v130
    %660 = vst.msk [vmem:[#allocation8 + $0x10] sm:$0xff] %vm658, %v131
    %661 = vst.msk [vmem:[#allocation8 + $0x20] sm:$0xff] %vm658, %v132
    %662 = vst.msk [vmem:[#allocation8 + $0x30] sm:$0xff] %vm658, %v133
    // Predicated region
    $region26: #{tpu_custom_call.1} parent=1 // pred_check
      _
    $region27: #{tpu_custom_call.1} parent=1 // pred_check_branch
      %664 = sbr.rel (0) target = $region29
    $region28: #{tpu_custom_call.1} parent=1 // pred_region
      %s666 = ssub.s32 1024, 1024
      %667 = vsyncadd [#allocation4], %s666
      %s668 = sshll.u32 [#allocation8], 4
      %s669 = int_to_ptr.vmem [resolvable:$true] %s668
      %674 = dma.vmem_to_hbm [thread:$0]  %s669, 1024, %s3, [#allocation4], 256, 256, 16
    $region29: #{tpu_custom_call.1} parent=1 // pred_fallthru
      _
    // Predicated region
    $region30: #{tpu_custom_call.1} parent=1 // pred_check
      _
    $region31: #{tpu_custom_call.1} parent=1 // pred_check_branch
      %676 = sbr.rel (0) target = $region33
    $region32: #{tpu_custom_call.1} parent=1 // pred_region
      %677 = dma.done [#allocation4], 1024
    $region33: #{tpu_custom_call.1} parent=1 // pred_fallthru
      _
    %678 = vsyncpa [#allocation3], 1
    %679 = vsyncpa [#allocation6], 1
    %680 = vsyncpa [#allocation4], 1

</llo_original>
